<compile_context>
chip_gen: v6e
topology: v6e:2x2x1
jax: 0.10.0
libtpu: 0.0.40
codegen_flags: <defaults>
</compile_context>

<pallas_src>
import functools

import jax
import jax.numpy as jnp
from jax import lax
from jax.experimental import pallas as pl
from jax.experimental.pallas import tpu as pltpu


def _store_group(num_heads: int, head_dim: int) -> int:
    """Smallest number of consecutive heads whose combined lane span is a
    multiple of 128, so the per-group store into the attn scratch is an
    unmasked lane-dense store. Falls back to the full row if impossible."""
    if head_dim % 128 == 0:
        return 1
    g = 1
    while g <= num_heads:
        if (g * head_dim) % 128 == 0 and num_heads % g == 0:
            return g
        g += 1
    return num_heads


def _attention_kernel(x_ref, wqkv_ref, wproj_ref, bproj_ref, o_ref, attn_ref,
                      *, num_heads: int, head_dim: int):
    # x_ref:     (L, D)    activations (batch dim squeezed by BlockSpec)
    # wqkv_ref:  (D, 3D)   bf16 qkv weight, pre-transposed, scale folded into q cols
    # wproj_ref: (D, D)    bf16 proj weight, pre-transposed
    # bproj_ref: (1, D)    f32 proj bias
    # o_ref:     (L, D)    output (caller dtype)
    # attn_ref:  (L, D)    bf16 VMEM scratch collecting per-head outputs
    D = num_heads * head_dim

    # ---- QKV projection (bf16 MXU, f32 accumulation) ----
    x = x_ref[...].astype(jnp.bfloat16)
    qkv = jnp.dot(x, wqkv_ref[...], preferred_element_type=jnp.float32)  # (L, 3D)

    # softmax scale already folded into the q-columns of wqkv at prep time.
    q = qkv[:, 0 * D:1 * D].astype(jnp.bfloat16)
    k = qkv[:, 1 * D:2 * D].astype(jnp.bfloat16)
    v = qkv[:, 2 * D:3 * D].astype(jnp.bfloat16)

    # ---- per-head SDPA; heads grouped so scratch stores are 128-lane slabs ----
    # TODO(synk): for long sequences (L >~ 1-2K) move the key axis onto an
    # "arbitrary" grid dimension with flash-style online softmax instead of a
    # dense (L, L) f32 score matrix per head.
    # TODO(synk): q/k/v reads are still head_dim-lane-offset slices; staging
    # q/k/v into an (H, L, head_dim) scratch would make them leading-axis
    # reads, at the cost of an extra relayout pass after the QKV matmul.
    group = _store_group(num_heads, head_dim)
    for g in range(num_heads // group):
        outs = []
        for i in range(group):
            h = g * group + i
            lo = h * head_dim
            hi = lo + head_dim
            qh = q[:, lo:hi]                     # (L, hd) bf16
            kh = k[:, lo:hi]
            vh = v[:, lo:hi]

            # q @ k^T without materializing a transpose (contract last dims).
            s = lax.dot_general(qh, kh, (((1,), (1,)), ((), ())),
                                preferred_element_type=jnp.float32)      # (L, L)
            s_max = jnp.max(s, axis=-1, keepdims=True)
            p = jnp.exp(s - s_max)
            # approx reciprocal -> EUP slot; fine for inference.
            # TODO(synk): use approx=False (or renormalize) if reused for training.
            inv = pl.reciprocal(jnp.sum(p, axis=-1, keepdims=True), approx=True)
            p = (p * inv).astype(jnp.bfloat16)
            outs.append(jnp.dot(p, vh, preferred_element_type=jnp.float32)
                        .astype(jnp.bfloat16))                           # (L, hd)

        block = outs[0] if group == 1 else jnp.concatenate(outs, axis=-1)
        glo = g * group * head_dim
        attn_ref[:, glo:glo + group * head_dim] = block                  # lane-dense

    # ---- output projection (+ f32 bias) ----
    out = jnp.dot(attn_ref[...], wproj_ref[...],
                  preferred_element_type=jnp.float32)                    # (L, D)
    out = out + bproj_ref[...]
    o_ref[...] = out.astype(o_ref.dtype)


def prepare_attention_params(wqkv, wproj, bproj, *, num_heads: int):
    """One-time parameter prep: transpose, fold softmax scale into the q
    columns, cast to bf16.  Call once at init, NOT per forward."""
    D = wqkv.shape[1]
    head_dim = D // num_heads
    scale = head_dim ** (-0.5)
    col_scale = jnp.concatenate([jnp.full((D,), scale, jnp.float32),
                                 jnp.ones((2 * D,), jnp.float32)])
    wqkv_t = (wqkv.T.astype(jnp.float32) * col_scale[None, :]).astype(jnp.bfloat16)
    wproj_t = wproj.T.astype(jnp.bfloat16)                   # (D, D)
    bproj_2d = bproj.reshape(1, D).astype(jnp.float32)       # (1, D)
    return wqkv_t, wproj_t, bproj_2d


def attention_forward(x, wqkv_t, wproj_t, bproj_2d, *, num_heads: int):
    """x: (B, L, D) (any float dtype); prepared params from prepare_attention_params."""
    B, L, D = x.shape
    head_dim = D // num_heads

    kernel = functools.partial(_attention_kernel,
                               num_heads=num_heads, head_dim=head_dim)

    x_bytes = jnp.dtype(x.dtype).itemsize
    out_bytes = x_bytes

    # Cost hint for the XLA scheduler.
    flops = 2 * B * (L * D * 3 * D                       # qkv projection
                     + 2 * num_heads * L * L * head_dim  # q@k^T and p@v
                     + L * D * D)                        # output projection
    transcendentals = B * num_heads * L * L              # exp in softmax
    bytes_accessed = (B * L * D * x_bytes + B * L * D * out_bytes
                      + (D * 3 * D + D * D) * 2 + D * 4)
    cost = pl.CostEstimate(flops=int(flops),
                           transcendentals=int(transcendentals),
                           bytes_accessed=int(bytes_accessed))

    # VMEM budget derived from actual tile sizes (+50% headroom), so it stays
    # modest on v7x (64 MiB physical) while still covering large D on v5e/v6e.
    # TODO(synk): pipeline_mode=pl.Buffered(1) on the two weight BlockSpecs
    # would halve their resident footprint (their index_map is constant).
    blk_bytes = (2 * L * D * x_bytes                     # x, double-buffered
                 + 2 * L * D * out_bytes                 # out, double-buffered
                 + 2 * (D * 3 * D + D * D) * 2           # bf16 weights, double-buffered
                 + 2 * D * 4                             # bias
                 + L * D * 2                             # bf16 attn scratch
                 + L * 3 * D * 4 + 3 * L * D * 2         # qkv f32 + q/k/v bf16
                 + 2 * L * L * 4)                        # score tiles
    vmem_limit = max(int(1.5 * blk_bytes), 16 * 1024 * 1024)

    # TODO(synk): for v7x (2 TensorCores/chip) with B == 1, add a second
    # "parallel" grid axis (query-row tiles, with k/v computed once) so both
    # cores get work; with grid=(B,) one core idles for odd/unit batch.
    return pl.pallas_call(
        kernel,
        out_shape=jax.ShapeDtypeStruct((B, L, D), x.dtype),
        grid_spec=pltpu.PrefetchScalarGridSpec(
            num_scalar_prefetch=0,
            grid=(B,),
            in_specs=[
                pl.BlockSpec((None, L, D), lambda b: (b, 0, 0)),
                pl.BlockSpec((D, 3 * D), lambda b: (0, 0)),
                pl.BlockSpec((D, D), lambda b: (0, 0)),
                pl.BlockSpec((1, D), lambda b: (0, 0)),
            ],
            out_specs=pl.BlockSpec((None, L, D), lambda b: (b, 0, 0)),
            scratch_shapes=[pltpu.VMEM((L, D), jnp.bfloat16)],
        ),
        compiler_params=pltpu.CompilerParams(
            dimension_semantics=("parallel",),
            vmem_limit_bytes=vmem_limit),
        cost_estimate=cost,
    )(x, wqkv_t, wproj_t, bproj_2d)


def attention_reference(x, wqkv, wproj, bproj, *, num_heads: int):
    """Pure-JAX f32 reference mirroring the PyTorch forward."""
    B, L, D = x.shape
    hd = D // num_heads
    qkv = jnp.einsum('bld,ed->ble', x, wqkv)                    # (B, L, 3D)
    qkv = qkv.reshape(B, L, 3, num_heads, hd).transpose(2, 0, 3, 1, 4)
    q, k, v = qkv[0], qkv[1], qkv[2]                            # (B, H, L, hd)
    s = jnp.einsum('bhld,bhmd->bhlm', q, k) * (hd ** -0.5)
    p = jax.nn.softmax(s, axis=-1)
    o = jnp.einsum('bhlm,bhmd->bhld', p, v)                     # (B, H, L, hd)
    o = o.transpose(0, 2, 1, 3).reshape(B, L, D)
    return jnp.einsum('bld,ed->ble', o, wproj) + bproj


if __name__ == "__main__":
    # Small shapes consistent with the module: B=2, L=8, D=32, num_heads=4
    B, L, D, H = 2, 8, 32, 4

    key = jax.random.PRNGKey(0)
    kx, kq, kp, kb = jax.random.split(key, 4)

    x = jax.random.normal(kx, (B, L, D), dtype=jnp.float32)
    # Shapes match nn.Linear(dim, dim*3, bias=False) and nn.Linear(dim, dim).
    wqkv = jax.random.normal(kq, (3 * D, D), dtype=jnp.float32) * (1.0 / D ** 0.5)
    wproj = jax.random.normal(kp, (D, D), dtype=jnp.float32) * (1.0 / D ** 0.5)
    bproj = jax.random.normal(kb, (D,), dtype=jnp.float32) * 0.01

    # One-time weight prep (hoisted out of the per-call path).
    params = prepare_attention_params(wqkv, wproj, bproj, num_heads=H)

    out = attention_forward(x, *params, num_heads=H)
    out = jax.block_until_ready(out)

    ref = attention_reference(x, wqkv, wproj, bproj, num_heads=H)
    assert out.shape == (B, L, D)
    max_err = float(jnp.max(jnp.abs(out - ref)))
    # bf16 MXU inputs + approx softmax reciprocal vs f32 reference.
    assert jnp.allclose(out, ref, atol=3e-2, rtol=3e-2), (
        f"mismatch vs reference: max abs err {max_err}")

    print("KERNEL_OK")
</pallas_src>

<mosaic_0001>
module attributes {stable_mosaic.version = 11 : i64} {
  func.func @_attention_kernel(%arg0: i32, %arg1: memref<1x8x32xf32, #tpu.memory_space<vmem>>, %arg2: memref<32x96xbf16, #tpu.memory_space<vmem>>, %arg3: memref<32x32xbf16, #tpu.memory_space<vmem>>, %arg4: memref<1x32xf32, #tpu.memory_space<vmem>>, %arg5: memref<1x8x32xf32, #tpu.memory_space<vmem>>, %arg6: memref<8x32xbf16, #tpu.memory_space<vmem>>) attributes {dimension_semantics = [#tpu.dimension_semantics<parallel>], iteration_bounds = array<i64: 2>, scalar_prefetch = 0 : i64, scratch_operands = 1 : i64, tpu.core_type = #tpu.core_type<tc>, window_params = [{transform_indices = @transform_0, window_bounds = array<i64: 1, 8, 32>}, {pipeline_mode = #tpu.pipeline_mode<synchronous>, transform_indices = @transform_1, window_bounds = array<i64: 32, 96>}, {pipeline_mode = #tpu.pipeline_mode<synchronous>, transform_indices = @transform_2, window_bounds = array<i64: 32, 32>}, {pipeline_mode = #tpu.pipeline_mode<synchronous>, transform_indices = @transform_3, window_bounds = array<i64: 1, 32>}, {transform_indices = @transform_4, window_bounds = array<i64: 1, 8, 32>}]} {
    %c0 = arith.constant 0 : index
    %c0_0 = arith.constant 0 : index
    %c0_1 = arith.constant 0 : index
    %0 = vector.load %arg1[%c0, %c0_0, %c0_1] : memref<1x8x32xf32, #tpu.memory_space<vmem>>, vector<1x8x32xf32>
    %1 = vector.shape_cast %0 : vector<1x8x32xf32> to vector<8x32xf32>
    %2 = arith.truncf %1 : vector<8x32xf32> to vector<8x32xbf16>
    %c0_2 = arith.constant 0 : index
    %c0_3 = arith.constant 0 : index
    %3 = vector.load %arg2[%c0_2, %c0_3] : memref<32x96xbf16, #tpu.memory_space<vmem>>, vector<32x96xbf16>
    %cst = arith.constant dense<0.000000e+00> : vector<8x96xf32>
    %4 = tpu.matmul %2, %3, %cst {dimension_numbers = #tpu.dot_dimension_numbers<[1], [0], [0], [1], [0, 0, 1, 1], [], []>} : vector<8x32xbf16>, vector<32x96xbf16>, vector<8x96xf32> -> vector<8x96xf32>
    %5 = vector.extract_strided_slice %4 {offsets = [0, 0], sizes = [8, 32], strides = [1, 1]} : vector<8x96xf32> to vector<8x32xf32>
    %6 = arith.truncf %5 : vector<8x32xf32> to vector<8x32xbf16>
    %7 = vector.extract_strided_slice %4 {offsets = [0, 32], sizes = [8, 32], strides = [1, 1]} : vector<8x96xf32> to vector<8x32xf32>
    %8 = arith.truncf %7 : vector<8x32xf32> to vector<8x32xbf16>
    %9 = vector.extract_strided_slice %4 {offsets = [0, 64], sizes = [8, 32], strides = [1, 1]} : vector<8x96xf32> to vector<8x32xf32>
    %10 = arith.truncf %9 : vector<8x32xf32> to vector<8x32xbf16>
    %11 = vector.extract_strided_slice %6 {offsets = [0, 0], sizes = [8, 8], strides = [1, 1]} : vector<8x32xbf16> to vector<8x8xbf16>
    %12 = vector.extract_strided_slice %8 {offsets = [0, 0], sizes = [8, 8], strides = [1, 1]} : vector<8x32xbf16> to vector<8x8xbf16>
    %13 = vector.extract_strided_slice %10 {offsets = [0, 0], sizes = [8, 8], strides = [1, 1]} : vector<8x32xbf16> to vector<8x8xbf16>
    %cst_4 = arith.constant dense<0.000000e+00> : vector<8x8xf32>
    %14 = tpu.matmul %11, %12, %cst_4 {dimension_numbers = #tpu.dot_dimension_numbers<[1], [1], [0], [0], [0, 0, 1, 0], [], []>} : vector<8x8xbf16>, vector<8x8xbf16>, vector<8x8xf32> -> vector<8x8xf32>
    %cst_5 = arith.constant dense<0xFF800000> : vector<8xf32>
    %15 = vector.multi_reduction <maximumf>, %14, %cst_5 [1] : vector<8x8xf32> to vector<8xf32>
    %16 = vector.shape_cast %15 : vector<8xf32> to vector<8x1xf32>
    %17 = vector.broadcast %16 : vector<8x1xf32> to vector<8x8xf32>
    %18 = arith.subf %14, %17 : vector<8x8xf32>
    %19 = math.exp %18 : vector<8x8xf32>
    %cst_6 = arith.constant dense<0.000000e+00> : vector<8xf32>
    %20 = vector.multi_reduction <add>, %19, %cst_6 [1] : vector<8x8xf32> to vector<8xf32>
    %21 = vector.shape_cast %20 : vector<8xf32> to vector<8x1xf32>
    %22 = tpu.reciprocal %21 {approx = true} : vector<8x1xf32> -> vector<8x1xf32>
    %23 = vector.broadcast %22 : vector<8x1xf32> to vector<8x8xf32>
    %24 = arith.mulf %19, %23 : vector<8x8xf32>
    %25 = arith.truncf %24 : vector<8x8xf32> to vector<8x8xbf16>
    %cst_7 = arith.constant dense<0.000000e+00> : vector<8x8xf32>
    %26 = tpu.matmul %25, %13, %cst_7 {dimension_numbers = #tpu.dot_dimension_numbers<[1], [0], [0], [1], [0, 0, 1, 1], [], []>} : vector<8x8xbf16>, vector<8x8xbf16>, vector<8x8xf32> -> vector<8x8xf32>
    %27 = arith.truncf %26 : vector<8x8xf32> to vector<8x8xbf16>
    %28 = vector.extract_strided_slice %6 {offsets = [0, 8], sizes = [8, 8], strides = [1, 1]} : vector<8x32xbf16> to vector<8x8xbf16>
    %29 = vector.extract_strided_slice %8 {offsets = [0, 8], sizes = [8, 8], strides = [1, 1]} : vector<8x32xbf16> to vector<8x8xbf16>
    %30 = vector.extract_strided_slice %10 {offsets = [0, 8], sizes = [8, 8], strides = [1, 1]} : vector<8x32xbf16> to vector<8x8xbf16>
    %cst_8 = arith.constant dense<0.000000e+00> : vector<8x8xf32>
    %31 = tpu.matmul %28, %29, %cst_8 {dimension_numbers = #tpu.dot_dimension_numbers<[1], [1], [0], [0], [0, 0, 1, 0], [], []>} : vector<8x8xbf16>, vector<8x8xbf16>, vector<8x8xf32> -> vector<8x8xf32>
    %cst_9 = arith.constant dense<0xFF800000> : vector<8xf32>
    %32 = vector.multi_reduction <maximumf>, %31, %cst_9 [1] : vector<8x8xf32> to vector<8xf32>
    %33 = vector.shape_cast %32 : vector<8xf32> to vector<8x1xf32>
    %34 = vector.broadcast %33 : vector<8x1xf32> to vector<8x8xf32>
    %35 = arith.subf %31, %34 : vector<8x8xf32>
    %36 = math.exp %35 : vector<8x8xf32>
    %cst_10 = arith.constant dense<0.000000e+00> : vector<8xf32>
    %37 = vector.multi_reduction <add>, %36, %cst_10 [1] : vector<8x8xf32> to vector<8xf32>
    %38 = vector.shape_cast %37 : vector<8xf32> to vector<8x1xf32>
    %39 = tpu.reciprocal %38 {approx = true} : vector<8x1xf32> -> vector<8x1xf32>
    %40 = vector.broadcast %39 : vector<8x1xf32> to vector<8x8xf32>
    %41 = arith.mulf %36, %40 : vector<8x8xf32>
    %42 = arith.truncf %41 : vector<8x8xf32> to vector<8x8xbf16>
    %cst_11 = arith.constant dense<0.000000e+00> : vector<8x8xf32>
    %43 = tpu.matmul %42, %30, %cst_11 {dimension_numbers = #tpu.dot_dimension_numbers<[1], [0], [0], [1], [0, 0, 1, 1], [], []>} : vector<8x8xbf16>, vector<8x8xbf16>, vector<8x8xf32> -> vector<8x8xf32>
    %44 = arith.truncf %43 : vector<8x8xf32> to vector<8x8xbf16>
    %45 = vector.extract_strided_slice %6 {offsets = [0, 16], sizes = [8, 8], strides = [1, 1]} : vector<8x32xbf16> to vector<8x8xbf16>
    %46 = vector.extract_strided_slice %8 {offsets = [0, 16], sizes = [8, 8], strides = [1, 1]} : vector<8x32xbf16> to vector<8x8xbf16>
    %47 = vector.extract_strided_slice %10 {offsets = [0, 16], sizes = [8, 8], strides = [1, 1]} : vector<8x32xbf16> to vector<8x8xbf16>
    %cst_12 = arith.constant dense<0.000000e+00> : vector<8x8xf32>
    %48 = tpu.matmul %45, %46, %cst_12 {dimension_numbers = #tpu.dot_dimension_numbers<[1], [1], [0], [0], [0, 0, 1, 0], [], []>} : vector<8x8xbf16>, vector<8x8xbf16>, vector<8x8xf32> -> vector<8x8xf32>
    %cst_13 = arith.constant dense<0xFF800000> : vector<8xf32>
    %49 = vector.multi_reduction <maximumf>, %48, %cst_13 [1] : vector<8x8xf32> to vector<8xf32>
    %50 = vector.shape_cast %49 : vector<8xf32> to vector<8x1xf32>
    %51 = vector.broadcast %50 : vector<8x1xf32> to vector<8x8xf32>
    %52 = arith.subf %48, %51 : vector<8x8xf32>
    %53 = math.exp %52 : vector<8x8xf32>
    %cst_14 = arith.constant dense<0.000000e+00> : vector<8xf32>
    %54 = vector.multi_reduction <add>, %53, %cst_14 [1] : vector<8x8xf32> to vector<8xf32>
    %55 = vector.shape_cast %54 : vector<8xf32> to vector<8x1xf32>
    %56 = tpu.reciprocal %55 {approx = true} : vector<8x1xf32> -> vector<8x1xf32>
    %57 = vector.broadcast %56 : vector<8x1xf32> to vector<8x8xf32>
    %58 = arith.mulf %53, %57 : vector<8x8xf32>
    %59 = arith.truncf %58 : vector<8x8xf32> to vector<8x8xbf16>
    %cst_15 = arith.constant dense<0.000000e+00> : vector<8x8xf32>
    %60 = tpu.matmul %59, %47, %cst_15 {dimension_numbers = #tpu.dot_dimension_numbers<[1], [0], [0], [1], [0, 0, 1, 1], [], []>} : vector<8x8xbf16>, vector<8x8xbf16>, vector<8x8xf32> -> vector<8x8xf32>
    %61 = arith.truncf %60 : vector<8x8xf32> to vector<8x8xbf16>
    %62 = vector.extract_strided_slice %6 {offsets = [0, 24], sizes = [8, 8], strides = [1, 1]} : vector<8x32xbf16> to vector<8x8xbf16>
    %63 = vector.extract_strided_slice %8 {offsets = [0, 24], sizes = [8, 8], strides = [1, 1]} : vector<8x32xbf16> to vector<8x8xbf16>
    %64 = vector.extract_strided_slice %10 {offsets = [0, 24], sizes = [8, 8], strides = [1, 1]} : vector<8x32xbf16> to vector<8x8xbf16>
    %cst_16 = arith.constant dense<0.000000e+00> : vector<8x8xf32>
    %65 = tpu.matmul %62, %63, %cst_16 {dimension_numbers = #tpu.dot_dimension_numbers<[1], [1], [0], [0], [0, 0, 1, 0], [], []>} : vector<8x8xbf16>, vector<8x8xbf16>, vector<8x8xf32> -> vector<8x8xf32>
    %cst_17 = arith.constant dense<0xFF800000> : vector<8xf32>
    %66 = vector.multi_reduction <maximumf>, %65, %cst_17 [1] : vector<8x8xf32> to vector<8xf32>
    %67 = vector.shape_cast %66 : vector<8xf32> to vector<8x1xf32>
    %68 = vector.broadcast %67 : vector<8x1xf32> to vector<8x8xf32>
    %69 = arith.subf %65, %68 : vector<8x8xf32>
    %70 = math.exp %69 : vector<8x8xf32>
    %cst_18 = arith.constant dense<0.000000e+00> : vector<8xf32>
    %71 = vector.multi_reduction <add>, %70, %cst_18 [1] : vector<8x8xf32> to vector<8xf32>
    %72 = vector.shape_cast %71 : vector<8xf32> to vector<8x1xf32>
    %73 = tpu.reciprocal %72 {approx = true} : vector<8x1xf32> -> vector<8x1xf32>
    %74 = vector.broadcast %73 : vector<8x1xf32> to vector<8x8xf32>
    %75 = arith.mulf %70, %74 : vector<8x8xf32>
    %76 = arith.truncf %75 : vector<8x8xf32> to vector<8x8xbf16>
    %cst_19 = arith.constant dense<0.000000e+00> : vector<8x8xf32>
    %77 = tpu.matmul %76, %64, %cst_19 {dimension_numbers = #tpu.dot_dimension_numbers<[1], [0], [0], [1], [0, 0, 1, 1], [], []>} : vector<8x8xbf16>, vector<8x8xbf16>, vector<8x8xf32> -> vector<8x8xf32>
    %78 = arith.truncf %77 : vector<8x8xf32> to vector<8x8xbf16>
    %79 = tpu.concatenate %27, %44, %61, %78 in 1 : vector<8x8xbf16>, vector<8x8xbf16>, vector<8x8xbf16>, vector<8x8xbf16> -> vector<8x32xbf16>
    %c0_20 = arith.constant 0 : index
    %c0_21 = arith.constant 0 : index
    %80 = vector.load %arg6[%c0_20, %c0_21] : memref<8x32xbf16, #tpu.memory_space<vmem>>, vector<8x32xbf16>
    tpu.vector_store %arg6[%c0_20, %c0_21], %79 {strides = array<i32>} : memref<8x32xbf16, #tpu.memory_space<vmem>>, vector<8x32xbf16>,
    %c0_22 = arith.constant 0 : index
    %c0_23 = arith.constant 0 : index
    %81 = vector.load %arg6[%c0_22, %c0_23] : memref<8x32xbf16, #tpu.memory_space<vmem>>, vector<8x32xbf16>
    %c0_24 = arith.constant 0 : index
    %c0_25 = arith.constant 0 : index
    %82 = vector.load %arg3[%c0_24, %c0_25] : memref<32x32xbf16, #tpu.memory_space<vmem>>, vector<32x32xbf16>
    %cst_26 = arith.constant dense<0.000000e+00> : vector<8x32xf32>
    %83 = tpu.matmul %81, %82, %cst_26 {dimension_numbers = #tpu.dot_dimension_numbers<[1], [0], [0], [1], [0, 0, 1, 1], [], []>} : vector<8x32xbf16>, vector<32x32xbf16>, vector<8x32xf32> -> vector<8x32xf32>
    %c0_27 = arith.constant 0 : index
    %c0_28 = arith.constant 0 : index
    %84 = vector.load %arg4[%c0_27, %c0_28] : memref<1x32xf32, #tpu.memory_space<vmem>>, vector<1x32xf32>
    %85 = vector.broadcast %84 : vector<1x32xf32> to vector<8x32xf32>
    %86 = arith.addf %83, %85 : vector<8x32xf32>
    %c0_29 = arith.constant 0 : index
    %c0_30 = arith.constant 0 : index
    %c0_31 = arith.constant 0 : index
    %87 = vector.load %arg5[%c0_29, %c0_30, %c0_31] : memref<1x8x32xf32, #tpu.memory_space<vmem>>, vector<1x8x32xf32>
    %88 = vector.shape_cast %87 : vector<1x8x32xf32> to vector<8x32xf32>
    %89 = vector.shape_cast %86 : vector<8x32xf32> to vector<1x8x32xf32>
    tpu.vector_store %arg5[%c0_29, %c0_30, %c0_31], %89 {strides = array<i32>} : memref<1x8x32xf32, #tpu.memory_space<vmem>>, vector<1x8x32xf32>,
    return
  }
  func.func @transform_0(%arg0: i32) -> (i32, i32, i32) {
    %c0_i32 = arith.constant 0 : i32
    %c0_i32_0 = arith.constant 0 : i32
    %c0_i32_1 = arith.constant 0 : i32
    return %arg0, %c0_i32, %c0_i32_0 : i32, i32, i32
  }
  func.func @transform_1(%arg0: i32) -> (i32, i32) {
    %c0_i32 = arith.constant 0 : i32
    %c0_i32_0 = arith.constant 0 : i32
    %c0_i32_1 = arith.constant 0 : i32
    return %c0_i32, %c0_i32_0 : i32, i32
  }
  func.func @transform_2(%arg0: i32) -> (i32, i32) {
    %c0_i32 = arith.constant 0 : i32
    %c0_i32_0 = arith.constant 0 : i32
    %c0_i32_1 = arith.constant 0 : i32
    return %c0_i32, %c0_i32_0 : i32, i32
  }
  func.func @transform_3(%arg0: i32) -> (i32, i32) {
    %c0_i32 = arith.constant 0 : i32
    %c0_i32_0 = arith.constant 0 : i32
    %c0_i32_1 = arith.constant 0 : i32
    return %c0_i32, %c0_i32_0 : i32, i32
  }
  func.func @transform_4(%arg0: i32) -> (i32, i32, i32) {
    %c0_i32 = arith.constant 0 : i32
    %c0_i32_0 = arith.constant 0 : i32
    %c0_i32_1 = arith.constant 0 : i32
    return %arg0, %c0_i32, %c0_i32_0 : i32, i32, i32
  }
}

</mosaic_0001>

<llo_original>
// kernel: tpu_custom_call.1
$region0: #{tpu_custom_call.1}
  #allocation0 [shape = 'u32[]', space=smem, size = 0x4, offset = 0x4, fixed_abs, tag = 'smem constant byte address 0x4 - core index']
  #allocation1 [shape = 'u32[144,128]{1,0:T(1,128)}', space=vmem, size = 0x12000, scoped, tag = 'internal scratch']
  #allocation2 [shape = 'bf16[8,32]{1,0:T(8,128)(2,1)}', space=vmem, size = 0x800, scoped, tag = 'scratch operand']
  %s0 = inlined_call_operand.hbm [shape: f32[2,8,32], index: 0, kind: input, shape index: {}]
  %s1 = inlined_call_operand.hbm [shape: bf16[32,96], index: 1, kind: input, shape index: {}]
  %s2 = inlined_call_operand.hbm [shape: bf16[32,32], index: 2, kind: input, shape index: {}]
  %s3 = inlined_call_operand.vmem [shape: f32[1,32], index: 3, kind: input, shape index: {}]
  %s4 = inlined_call_operand.hbm [shape: f32[2,8,32], index: 4, kind: output, shape index: {}]
  %s5 = sld [smem:[#allocation0]]
  $region61: #{tpu_custom_call.1} parent=0
    _
  %s7 = ssub.s32 1, %s5
  %s8 = scalar_select 0, %s7, %s5
  $region1: #{tpu_custom_call.1} parent=0
    #allocation3 [shape = 'u8[8192]{0}', space=vmem, size = 0x2000, scoped, tag = 'input window, operand 0']
    #allocation4 [shape = 's32[2]{0}', space=sflag, size = 0x8, scoped, tag = 'scoped memory for tpu_custom_call.1']
    #allocation5 [shape = 's32[2]{0}', space=sflag, size = 0x8, scoped, tag = 'scoped memory for tpu_custom_call.1']
    #allocation6 [shape = 'u8[8192]{0}', space=vmem, size = 0x2000, scoped, tag = 'input window, operand 1, single buffered']
    #allocation7 [shape = 's32[1]{0}', space=sflag, size = 0x4, scoped, tag = 'scoped memory for tpu_custom_call.1']
    #allocation8 [shape = 'u8[8192]{0}', space=vmem, size = 0x2000, scoped, tag = 'input window, operand 2, single buffered']
    #allocation9 [shape = 'u8[8192]{0}', space=vmem, size = 0x2000, scoped, tag = 'output window, operand 0']
    %9 = vsyncpa [#allocation4], 0
    %s10 = scalar_lea.sflag [#allocation4], 1
    %11 = vsyncpa %s10, 0
    %12 = vsyncpa [#allocation7], 0
    %13 = vsyncpa [#allocation5], 0
    %s14 = scalar_lea.sflag [#allocation5], 1
    %15 = vsyncpa %s14, 0
    loop: start=0, step=1, limit=4
    $region2: #{tpu_custom_call.1} parent=1 // loop_pre_header
      _
    $region3: #{tpu_custom_call.1} parent=1 // loop_header
      %s17 = sphi 0, %s21
      %p18 = scmp.ge.s32.totalorder %s17, 4
      %s27 = sphi 0, %s29
      %s30 = sphi 0, %s27
      %s31 = sphi 0, %s30
      %s47 = sphi 0, %s31
      %s51 = sphi 0, %s51
      %s53 = sphi 0, %s51
      %s54 = sphi 0, %s53
      %s68 = sphi 0, %s54
      %s72 = sphi 0, %s72
      %s74 = sphi 0, %s72
      %s75 = sphi 0, %s74
      %s89 = sphi 0, %s75
      %s93 = sphi 0, %s93
      %s95 = sphi 0, %s93
      %s96 = sphi 0, %s95
      %s110 = sphi 0, %s96
      %s116 = sphi 0, %s118
      %s119 = sphi 0, %s116
      %s120 = sphi 0, %s119
      %s136 = sphi 0, %s120
    $region4: #{tpu_custom_call.1} parent=1 // loop_header_branch
      %20 = sbr.rel (%p18) target = $region8
    $region5: #{tpu_custom_call.1} parent=1 // loop_body
      %s22 = ssub.s32 %s17, 1
      %s23 = ssub.s32 %s17, 2
      %s24 = sadd.s32 %s17, 1
      %s25 = ssub.s32 %s17, %s24
      %p26 = scmp.eq.s32.totalorder %s25, 0
      %s28 = sadd.s32 %s27, 1
      %s29 = scalar_select %p26, %s27, %s28
      %p32 = pneg %p26
      %p33 = scmp.eq.s32.totalorder %s17, 1
      %p34 = por %p32, %p33
      %p35 = scmp.ne.s32.totalorder %s27, %s30
      %p36 = scmp.eq.s32.totalorder %s17, 0
      %p37 = por %p35, %p36
      %p38 = scmp.ne.s32.totalorder %s27, %s30
      %p39 = scmp.eq.s32.totalorder %s22, 1
      %p40 = por %p38, %p39
      %p41 = scmp.ne.s32.totalorder %s30, %s31
      %p42 = scmp.eq.s32.totalorder %s22, 0
      %p43 = por %p41, %p42
      %p44 = scmp.ne.s32.totalorder %s30, %s31
      %p45 = scmp.eq.s32.totalorder %s23, 1
      %p46 = por %p44, %p45
      %p48 = scmp.ne.s32.totalorder %s31, %s47
      %p49 = scmp.eq.s32.totalorder %s23, 0
      %p50 = por %p48, %p49
      %s52 = sadd.s32 %s51, 1
      %p55 = scmp.eq.s32.totalorder %s17, 1
      %p56 = scmp.ne.s32.totalorder %s51, %s53
      %p57 = scmp.eq.s32.totalorder %s17, 0
      %p58 = por %p56, %p57
      %p59 = scmp.ne.s32.totalorder %s51, %s53
      %p60 = scmp.eq.s32.totalorder %s22, 1
      %p61 = por %p59, %p60
      %p62 = scmp.ne.s32.totalorder %s53, %s54
      %p63 = scmp.eq.s32.totalorder %s22, 0
      %p64 = por %p62, %p63
      %p65 = scmp.ne.s32.totalorder %s53, %s54
      %p66 = scmp.eq.s32.totalorder %s23, 1
      %p67 = por %p65, %p66
      %p69 = scmp.ne.s32.totalorder %s54, %s68
      %p70 = scmp.eq.s32.totalorder %s23, 0
      %p71 = por %p69, %p70
      %s73 = sadd.s32 %s72, 1
      %p76 = scmp.eq.s32.totalorder %s17, 1
      %p77 = scmp.ne.s32.totalorder %s72, %s74
      %p78 = scmp.eq.s32.totalorder %s17, 0
      %p79 = por %p77, %p78
      %p80 = scmp.ne.s32.totalorder %s72, %s74
      %p81 = scmp.eq.s32.totalorder %s22, 1
      %p82 = por %p80, %p81
      %p83 = scmp.ne.s32.totalorder %s74, %s75
      %p84 = scmp.eq.s32.totalorder %s22, 0
      %p85 = por %p83, %p84
      %p86 = scmp.ne.s32.totalorder %s74, %s75
      %p87 = scmp.eq.s32.totalorder %s23, 1
      %p88 = por %p86, %p87
      %p90 = scmp.ne.s32.totalorder %s75, %s89
      %p91 = scmp.eq.s32.totalorder %s23, 0
      %p92 = por %p90, %p91
      %s94 = sadd.s32 %s93, 1
      %p97 = scmp.eq.s32.totalorder %s17, 1
      %p98 = scmp.ne.s32.totalorder %s93, %s95
      %p99 = scmp.eq.s32.totalorder %s17, 0
      %p100 = por %p98, %p99
      %p101 = scmp.ne.s32.totalorder %s93, %s95
      %p102 = scmp.eq.s32.totalorder %s22, 1
      %p103 = por %p101, %p102
      %p104 = scmp.ne.s32.totalorder %s95, %s96
      %p105 = scmp.eq.s32.totalorder %s22, 0
      %p106 = por %p104, %p105
      %p107 = scmp.ne.s32.totalorder %s95, %s96
      %p108 = scmp.eq.s32.totalorder %s23, 1
      %p109 = por %p107, %p108
      %p111 = scmp.ne.s32.totalorder %s96, %s110
      %p112 = scmp.eq.s32.totalorder %s23, 0
      %p113 = por %p111, %p112
      %s114 = ssub.s32 %s17, %s24
      %p115 = scmp.eq.s32.totalorder %s114, 0
      %s117 = sadd.s32 %s116, 1
      %s118 = scalar_select %p115, %s116, %s117
      %p121 = pneg %p115
      %p122 = scmp.eq.s32.totalorder %s17, 1
      %p123 = por %p121, %p122
      %p124 = scmp.ne.s32.totalorder %s116, %s119
      %p125 = scmp.eq.s32.totalorder %s17, 0
      %p126 = por %p124, %p125
      %p127 = scmp.ne.s32.totalorder %s116, %s119
      %p128 = scmp.eq.s32.totalorder %s22, 1
      %p129 = por %p127, %p128
      %p130 = scmp.ne.s32.totalorder %s119, %s120
      %p131 = scmp.eq.s32.totalorder %s22, 0
      %p132 = por %p130, %p131
      %p133 = scmp.ne.s32.totalorder %s119, %s120
      %p134 = scmp.eq.s32.totalorder %s23, 1
      %p135 = por %p133, %p134
      %p137 = scmp.ne.s32.totalorder %s120, %s136
      %p138 = scmp.eq.s32.totalorder %s23, 0
      %p139 = por %p137, %p138
      %p140 = scmp.le.s32.totalorder 1, %s17
      %p141 = scmp.lt.s32.totalorder %s17, 3
      %p142 = pnand %p140, %p141
      %p143 = pneg %p142
      // Predicated region
      $region9: #{tpu_custom_call.1} parent=5 // pred_check
        _
      $region10: #{tpu_custom_call.1} parent=5 // pred_check_branch
        %145 = sbr.rel (%p142) target = $region12
      $region11: #{tpu_custom_call.1} parent=5 // pred_region
        %s146 = ssub.s32 %s17, 1
        // Predicated region
        $region13: #{tpu_custom_call.1} parent=11 // pred_check
          %p147 = pneg %p64
        $region14: #{tpu_custom_call.1} parent=11 // pred_check_branch
          %149 = sbr.rel (%p147) target = $region16
        $region15: #{tpu_custom_call.1} parent=11 // pred_region
          %s151 = ssub.s32 256, 256
          %152 = vsyncadd [#allocation7], %s151
          %s153 = sshll.u32 [#allocation6], 4
          %s154 = int_to_ptr.vmem [resolvable:$true] %s153
          %159 = dma.hbm_to_vmem [thread:$0]  %s1, 256, %s154, [#allocation7], 64, 64, 4
        $region16: #{tpu_custom_call.1} parent=11 // pred_fallthru
          _
        // Predicated region
        $region17: #{tpu_custom_call.1} parent=11 // pred_check
          %p160 = pneg %p85
        $region18: #{tpu_custom_call.1} parent=11 // pred_check_branch
          %162 = sbr.rel (%p160) target = $region20
        $region19: #{tpu_custom_call.1} parent=11 // pred_region
          %s164 = ssub.s32 256, 256
          %165 = vsyncadd [#allocation7], %s164
          %s166 = sshll.u32 [#allocation8], 4
          %s167 = int_to_ptr.vmem [resolvable:$true] %s166
          %172 = dma.hbm_to_vmem [thread:$0]  %s2, 256, %s167, [#allocation7], 64, 64, 4
        $region20: #{tpu_custom_call.1} parent=11 // pred_fallthru
          _
        // Predicated region
        $region21: #{tpu_custom_call.1} parent=11 // pred_check
          %p173 = pneg %p106
        $region22: #{tpu_custom_call.1} parent=11 // pred_check_branch
          %175 = sbr.rel (%p173) target = $region24
        $region23: #{tpu_custom_call.1} parent=11 // pred_region
          _
        $region24: #{tpu_custom_call.1} parent=11 // pred_fallthru
          _
      $region12: #{tpu_custom_call.1} parent=5 // pred_fallthru
        _
      %p176 = scmp.lt.s32.totalorder %s17, 2
      // Predicated region
      $region25: #{tpu_custom_call.1} parent=5 // pred_check
        %p177 = pneg %p176
      $region26: #{tpu_custom_call.1} parent=5 // pred_check_branch
        %179 = sbr.rel (%p177) target = $region28
      $region27: #{tpu_custom_call.1} parent=5 // pred_region
        // Predicated region
        $region29: #{tpu_custom_call.1} parent=27 // pred_check
          %p180 = pneg %p37
        $region30: #{tpu_custom_call.1} parent=27 // pred_check_branch
          %182 = sbr.rel (%p180) target = $region32
        $region31: #{tpu_custom_call.1} parent=27 // pred_region
          %s183 = sand.u32 %s27, 1
          %s184 = scalar_lea.sflag [#allocation4], %s183
          %s185 = sand.u32 %s27, 1
          %s186 = smul.addr %s185, 8
          %s187 = scalar_lea.vmem [#allocation3], %s186
          %s189 = ssub.s32 128, 128
          %190 = vsyncadd %s184, %s189
          %s191 = smul.addr %s17, 128
          %s192 = scalar_lea.hbm %s0, %s191
          %s194 = sshll.u32 %s187, 4
          %s195 = int_to_ptr.vmem [resolvable:$true] %s194
          %197 = dma.hbm_to_vmem [thread:$0]  %s192, 128, %s195, %s184
        $region32: #{tpu_custom_call.1} parent=27 // pred_fallthru
          _
      $region28: #{tpu_custom_call.1} parent=5 // pred_fallthru
        _
      %p198 = scmp.le.s32.totalorder 1, %s17
      %p199 = scmp.lt.s32.totalorder %s17, 3
      %p200 = pnand %p198, %p199
      %p201 = pneg %p200
      // Predicated region
      $region33: #{tpu_custom_call.1} parent=5 // pred_check
        _
      $region34: #{tpu_custom_call.1} parent=5 // pred_check_branch
        %203 = sbr.rel (%p200) target = $region36
      $region35: #{tpu_custom_call.1} parent=5 // pred_region
        %s204 = ssub.s32 %s17, 1
        %s205 = sand.u32 %s30, 1
        %s206 = scalar_lea.sflag [#allocation4], %s205
        %s207 = sand.u32 %s30, 1
        %s208 = smul.addr %s207, 8
        %s209 = scalar_lea.vmem [#allocation3], %s208
        // Predicated region
        $region37: #{tpu_custom_call.1} parent=35 // pred_check
          %p210 = pneg %p43
        $region38: #{tpu_custom_call.1} parent=35 // pred_check_branch
          %212 = sbr.rel (%p210) target = $region40
        $region39: #{tpu_custom_call.1} parent=35 // pred_region
          %213 = dma.done %s206, 128
        $region40: #{tpu_custom_call.1} parent=35 // pred_fallthru
          _
        // Predicated region
        $region41: #{tpu_custom_call.1} parent=35 // pred_check
          %p214 = pneg %p64
        $region42: #{tpu_custom_call.1} parent=35 // pred_check_branch
          %216 = sbr.rel (%p214) target = $region44
        $region43: #{tpu_custom_call.1} parent=35 // pred_region
          %217 = dma.done [#allocation7], 256
        $region44: #{tpu_custom_call.1} parent=35 // pred_fallthru
          _
        // Predicated region
        $region45: #{tpu_custom_call.1} parent=35 // pred_check
          %p218 = pneg %p85
        $region46: #{tpu_custom_call.1} parent=35 // pred_check_branch
          %220 = sbr.rel (%p218) target = $region48
        $region47: #{tpu_custom_call.1} parent=35 // pred_region
          %221 = dma.done [#allocation7], 256
        $region48: #{tpu_custom_call.1} parent=35 // pred_fallthru
          _
        %s222 = sand.u32 %s30, 1
        %s223 = scalar_lea.sflag [#allocation4], %s222
        %s224 = sand.u32 %s30, 1
        %s225 = smul.addr %s224, 8
        %s226 = scalar_lea.vmem [#allocation3], %s225
        %p227 = pneg %p43
        %p228 = pneg %p40
        %p229 = pneg %p64
        %p230 = pneg %p61
        %p231 = pneg %p85
        %p232 = pneg %p82
        %p233 = pneg %p106
        %p234 = pneg %p103
        %p235 = pneg %p132
        %p236 = pneg %p129
        %s237 = sand.u32 %s119, 1
        %s238 = scalar_lea.sflag [#allocation5], %s237
        %s239 = sand.u32 %s119, 1
        %s240 = smul.addr %s239, 8
        %s241 = scalar_lea.vmem [#allocation9], %s240
        %v243 = vld [vmem:[%s209] sm:$0xff]
        %v244 = vpack.c.bf16 %v243, %v243
        %v245 = vld [vmem:[#allocation6] sm:$0xf]
        %v246 = vld [vmem:[#allocation6 + $0x4] sm:$0xf]
        %v247 = vld [vmem:[#allocation6 + $0x8] sm:$0xf]
        %v248 = vld [vmem:[#allocation6 + $0xc] sm:$0xf]
        %v253 = vunpack.c.l.b16 %v245
        %v254 = vunpack.c.l.b16 %v246
        %v255 = vunpack.c.l.b16 %v247
        %v256 = vunpack.c.l.b16 %v248
        %v257 = vpack.c.b16 %v254, %v253
        %v258 = vpack.c.b16 %v256, %v255
        %vm261 = vcmask 261120
        %v263 = vsel %vm261, %v244, 0
        %265 = vmatprep.subr.bf16.mxu0 0
        %266 = vmatpush1.bf16.msra.mxu0 0
        %267 = vmatprep.subr.bf16.mxu0 0
        %268 = vmatpush1.bf16.msra.mxu0 0
        %269 = vmatprep.subr.bf16.mxu0 0
        %270 = vmatpush1.bf16.msra.mxu0 0
        %271 = vmatprep.subr.bf16.mxu0 0
        %272 = vmatpush1.bf16.msra.mxu0 0
        %273 = vmatprep.subr.bf16.mxu0 0
        %274 = vmatpush1.bf16.msra.mxu0 0
        %275 = vmatprep.subr.bf16.mxu0 0
        %276 = vmatpush1.bf16.msra.mxu0 0
        %277 = vmatprep.subr.bf16.mxu0 0
        %278 = vmatpush1.bf16.msra.mxu0 %v258
        %279 = vmatprep.subr.bf16.mxu0 0
        %280 = vmatpush1.bf16.msra.mxu0 %v257
        %281 = vmatprep.subr.bf16.mxu0 0
        %282 = vmatpush2.bf16.msra.mxu0 0
        %283 = vmatprep.subr.bf16.mxu0 0
        %284 = vmatpush2.bf16.msra.mxu0 0
        %285 = vmatprep.subr.bf16.mxu0 0
        %286 = vmatpush2.bf16.msra.mxu0 0
        %287 = vmatprep.subr.bf16.mxu0 0
        %288 = vmatpush2.bf16.msra.mxu0 0
        %289 = vmatprep.subr.bf16.mxu0 0
        %290 = vmatpush2.bf16.msra.mxu0 0
        %291 = vmatprep.subr.bf16.mxu0 0
        %292 = vmatpush2.bf16.msra.mxu0 0
        %293 = vmatprep.subr.bf16.mxu0 0
        %294 = vmatpush2.bf16.msra.mxu0 0
        %295 = vmatprep.subr.bf16.mxu0 0
        %296 = vmatpush2.bf16.msra.mxu0 0
        %297 = vmatprep.mubr.bf16.mxu0 0
        %298 = vmatmul.mubr.bf16.gmra.mxu0 %v263
        %v299 = vpop.f32.mrf.mxu0
        %v300 = vadd.f32 0.0, %v299
        %v301 = vpop.f32.mrf.mxu0
        %v302 = vpop.f32.mrf.mxu0
        %v303 = vpop.f32.mrf.mxu0
        %304 = vdwg.mxu0
        %v305 = vpack.c.bf16 %v300, %v300
        %307 = vrot.lane.b32.xlu0 %v305, 96
        %v308 = vpop.permute.xlu0 %307
        %vm309 = vcmask 64512
        %v311 = vsel %vm309, %v305, 0
        %v314 = vsel %vm309, %v308, 0
        %316 = vmatprep.subr.bf16.mxu0 0
        %317 = vmatpush1.bf16.xpose.msra.mxu0 0
        %318 = vmatprep.subr.bf16.mxu0 0
        %319 = vmatpush1.bf16.xpose.msra.mxu0 0
        %320 = vmatprep.subr.bf16.mxu0 0
        %321 = vmatpush1.bf16.xpose.msra.mxu0 0
        %322 = vmatprep.subr.bf16.mxu0 0
        %323 = vmatpush1.bf16.xpose.msra.mxu0 0
        %324 = vmatprep.subr.bf16.mxu0 0
        %325 = vmatpush1.bf16.xpose.msra.mxu0 0
        %326 = vmatprep.subr.bf16.mxu0 0
        %327 = vmatpush1.bf16.xpose.msra.mxu0 0
        %328 = vmatprep.subr.bf16.mxu0 0
        %329 = vmatpush1.bf16.xpose.msra.mxu0 0
        %330 = vmatprep.subr.bf16.mxu0 0
        %331 = vmatpush1.bf16.xpose.msra.mxu0 %v314
        %332 = vmatprep.subr.bf16.mxu0 0
        %333 = vmatpush2.bf16.xpose.msra.mxu0 0
        %334 = vmatprep.subr.bf16.mxu0 0
        %335 = vmatpush2.bf16.xpose.msra.mxu0 0
        %336 = vmatprep.subr.bf16.mxu0 0
        %337 = vmatpush2.bf16.xpose.msra.mxu0 0
        %338 = vmatprep.subr.bf16.mxu0 0
        %339 = vmatpush2.bf16.xpose.msra.mxu0 0
        %340 = vmatprep.subr.bf16.mxu0 0
        %341 = vmatpush2.bf16.xpose.msra.mxu0 0
        %342 = vmatprep.subr.bf16.mxu0 0
        %343 = vmatpush2.bf16.xpose.msra.mxu0 0
        %344 = vmatprep.subr.bf16.mxu0 0
        %345 = vmatpush2.bf16.xpose.msra.mxu0 0
        %346 = vmatprep.subr.bf16.mxu0 0
        %347 = vmatpush2.bf16.xpose.msra.mxu0 0
        %348 = vmatprep.mubr.bf16.mxu0 0
        %349 = vmatmul.mubr.bf16.gmra.mxu0 %v311
        %v350 = vpop.f32.mrf.mxu0
        %v351 = vadd.f32 0.0, %v350
        %v352 = vpop.f32.mrf.mxu0
        %v353 = vpop.f32.mrf.mxu0
        %v354 = vpop.f32.mrf.mxu0
        %355 = vdwg.mxu0
        %v356 = vsel %vm309, %v351, -inf
        %357 = vmax.xlane.f32.xlu0 %v356
        %v358 = vpop.xlane.xlu0 %357
        %v359 = vsub.f32 %v351, %v358
        %v360 = vmul.f32 %v359, 1.442695
        %v361 = vpow.pop %v360
        %v362 = vsel %vm309, %v361, 0.0
        %363 = vadd.xlane.f32.xlu0 %v362
        %v364 = vpop.xlane.xlu0 %363
        %v365 = vrcp.pop %v364
        %v366 = vmul.f32 %v361, %v365
        %v367 = vpack.c.bf16 %v366, %v366
        %368 = vrot.lane.b32.xlu0 %v305, 64
        %v369 = vpop.permute.xlu0 %368
        %v371 = vsel %vm309, %v367, 0
        %vm373 = vcmask 1043456
        %v375 = vsel %vm373, %v369, 0
        %377 = vmatprep.subr.bf16.mxu0 0
        %378 = vmatpush1.bf16.msra.mxu0 0
        %379 = vmatprep.subr.bf16.mxu0 0
        %380 = vmatpush1.bf16.msra.mxu0 0
        %381 = vmatprep.subr.bf16.mxu0 0
        %382 = vmatpush1.bf16.msra.mxu0 0
        %383 = vmatprep.subr.bf16.mxu0 0
        %384 = vmatpush1.bf16.msra.mxu0 0
        %385 = vmatprep.subr.bf16.mxu0 0
        %386 = vmatpush1.bf16.msra.mxu0 0
        %387 = vmatprep.subr.bf16.mxu0 0
        %388 = vmatpush1.bf16.msra.mxu0 0
        %389 = vmatprep.subr.bf16.mxu0 0
        %390 = vmatpush1.bf16.msra.mxu0 0
        %391 = vmatprep.subr.bf16.mxu0 0
        %392 = vmatpush1.bf16.msra.mxu0 %v375
        %393 = vmatprep.subr.bf16.mxu0 0
        %394 = vmatpush2.bf16.msra.mxu0 0
        %395 = vmatprep.subr.bf16.mxu0 0
        %396 = vmatpush2.bf16.msra.mxu0 0
        %397 = vmatprep.subr.bf16.mxu0 0
        %398 = vmatpush2.bf16.msra.mxu0 0
        %399 = vmatprep.subr.bf16.mxu0 0
        %400 = vmatpush2.bf16.msra.mxu0 0
        %401 = vmatprep.subr.bf16.mxu0 0
        %402 = vmatpush2.bf16.msra.mxu0 0
        %403 = vmatprep.subr.bf16.mxu0 0
        %404 = vmatpush2.bf16.msra.mxu0 0
        %405 = vmatprep.subr.bf16.mxu0 0
        %406 = vmatpush2.bf16.msra.mxu0 0
        %407 = vmatprep.subr.bf16.mxu0 0
        %408 = vmatpush2.bf16.msra.mxu0 0
        %409 = vmatprep.mubr.bf16.mxu0 0
        %410 = vmatmul.mubr.bf16.gmra.mxu0 %v371
        %v411 = vpop.f32.mrf.mxu0
        %v412 = vadd.f32 0.0, %v411
        %v413 = vpop.f32.mrf.mxu0
        %v414 = vpop.f32.mrf.mxu0
        %v415 = vpop.f32.mrf.mxu0
        %416 = vdwg.mxu0
        %v417 = vpack.c.bf16 %v412, %v412
        %418 = vrot.lane.b32.xlu0 %v305, 120
        %v419 = vpop.permute.xlu0 %418
        %420 = vrot.lane.b32.xlu0 %v305, 88
        %v421 = vpop.permute.xlu0 %420
        %v423 = vsel %vm309, %v419, 0
        %v426 = vsel %vm309, %v421, 0
        %428 = vmatprep.subr.bf16.mxu0 0
        %429 = vmatpush1.bf16.xpose.msra.mxu0 0
        %430 = vmatprep.subr.bf16.mxu0 0
        %431 = vmatpush1.bf16.xpose.msra.mxu0 0
        %432 = vmatprep.subr.bf16.mxu0 0
        %433 = vmatpush1.bf16.xpose.msra.mxu0 0
        %434 = vmatprep.subr.bf16.mxu0 0
        %435 = vmatpush1.bf16.xpose.msra.mxu0 0
        %436 = vmatprep.subr.bf16.mxu0 0
        %437 = vmatpush1.bf16.xpose.msra.mxu0 0
        %438 = vmatprep.subr.bf16.mxu0 0
        %439 = vmatpush1.bf16.xpose.msra.mxu0 0
        %440 = vmatprep.subr.bf16.mxu0 0
        %441 = vmatpush1.bf16.xpose.msra.mxu0 0
        %442 = vmatprep.subr.bf16.mxu0 0
        %443 = vmatpush1.bf16.xpose.msra.mxu0 %v426
        %444 = vmatprep.subr.bf16.mxu0 0
        %445 = vmatpush2.bf16.xpose.msra.mxu0 0
        %446 = vmatprep.subr.bf16.mxu0 0
        %447 = vmatpush2.bf16.xpose.msra.mxu0 0
        %448 = vmatprep.subr.bf16.mxu0 0
        %449 = vmatpush2.bf16.xpose.msra.mxu0 0
        %450 = vmatprep.subr.bf16.mxu0 0
        %451 = vmatpush2.bf16.xpose.msra.mxu0 0
        %452 = vmatprep.subr.bf16.mxu0 0
        %453 = vmatpush2.bf16.xpose.msra.mxu0 0
        %454 = vmatprep.subr.bf16.mxu0 0
        %455 = vmatpush2.bf16.xpose.msra.mxu0 0
        %456 = vmatprep.subr.bf16.mxu0 0
        %457 = vmatpush2.bf16.xpose.msra.mxu0 0
        %458 = vmatprep.subr.bf16.mxu0 0
        %459 = vmatpush2.bf16.xpose.msra.mxu0 0
        %460 = vmatprep.mubr.bf16.mxu0 0
        %461 = vmatmul.mubr.bf16.gmra.mxu0 %v423
        %v462 = vpop.f32.mrf.mxu0
        %v463 = vadd.f32 0.0, %v462
        %v464 = vpop.f32.mrf.mxu0
        %v465 = vpop.f32.mrf.mxu0
        %v466 = vpop.f32.mrf.mxu0
        %467 = vdwg.mxu0
        %v468 = vsel %vm309, %v463, -inf
        %469 = vmax.xlane.f32.xlu0 %v468
        %v470 = vpop.xlane.xlu0 %469
        %v471 = vsub.f32 %v463, %v470
        %v472 = vmul.f32 %v471, 1.442695
        %v473 = vpow.pop %v472
        %v474 = vsel %vm309, %v473, 0.0
        %475 = vadd.xlane.f32.xlu0 %v474
        %v476 = vpop.xlane.xlu0 %475
        %v477 = vrcp.pop %v476
        %v478 = vmul.f32 %v473, %v477
        %v479 = vpack.c.bf16 %v478, %v478
        %480 = vrot.lane.b32.xlu0 %v305, 56
        %v481 = vpop.permute.xlu0 %480
        %v483 = vsel %vm309, %v479, 0
        %v486 = vsel %vm373, %v481, 0
        %488 = vmatprep.subr.bf16.mxu0 0
        %489 = vmatpush1.bf16.msra.mxu0 0
        %490 = vmatprep.subr.bf16.mxu0 0
        %491 = vmatpush1.bf16.msra.mxu0 0
        %492 = vmatprep.subr.bf16.mxu0 0
        %493 = vmatpush1.bf16.msra.mxu0 0
        %494 = vmatprep.subr.bf16.mxu0 0
        %495 = vmatpush1.bf16.msra.mxu0 0
        %496 = vmatprep.subr.bf16.mxu0 0
        %497 = vmatpush1.bf16.msra.mxu0 0
        %498 = vmatprep.subr.bf16.mxu0 0
        %499 = vmatpush1.bf16.msra.mxu0 0
        %500 = vmatprep.subr.bf16.mxu0 0
        %501 = vmatpush1.bf16.msra.mxu0 0
        %502 = vmatprep.subr.bf16.mxu0 0
        %503 = vmatpush1.bf16.msra.mxu0 %v486
        %504 = vmatprep.subr.bf16.mxu0 0
        %505 = vmatpush2.bf16.msra.mxu0 0
        %506 = vmatprep.subr.bf16.mxu0 0
        %507 = vmatpush2.bf16.msra.mxu0 0
        %508 = vmatprep.subr.bf16.mxu0 0
        %509 = vmatpush2.bf16.msra.mxu0 0
        %510 = vmatprep.subr.bf16.mxu0 0
        %511 = vmatpush2.bf16.msra.mxu0 0
        %512 = vmatprep.subr.bf16.mxu0 0
        %513 = vmatpush2.bf16.msra.mxu0 0
        %514 = vmatprep.subr.bf16.mxu0 0
        %515 = vmatpush2.bf16.msra.mxu0 0
        %516 = vmatprep.subr.bf16.mxu0 0
        %517 = vmatpush2.bf16.msra.mxu0 0
        %518 = vmatprep.subr.bf16.mxu0 0
        %519 = vmatpush2.bf16.msra.mxu0 0
        %520 = vmatprep.mubr.bf16.mxu0 0
        %521 = vmatmul.mubr.bf16.gmra.mxu0 %v483
        %v522 = vpop.f32.mrf.mxu0
        %v523 = vadd.f32 0.0, %v522
        %v524 = vpop.f32.mrf.mxu0
        %v525 = vpop.f32.mrf.mxu0
        %v526 = vpop.f32.mrf.mxu0
        %527 = vdwg.mxu0
        %v528 = vpack.c.bf16 %v523, %v523
        %529 = vrot.lane.b32.xlu0 %v305, 112
        %v530 = vpop.permute.xlu0 %529
        %531 = vrot.lane.b32.xlu0 %v305, 80
        %v532 = vpop.permute.xlu0 %531
        %v534 = vsel %vm309, %v530, 0
        %v537 = vsel %vm309, %v532, 0
        %539 = vmatprep.subr.bf16.mxu0 0
        %540 = vmatpush1.bf16.xpose.msra.mxu0 0
        %541 = vmatprep.subr.bf16.mxu0 0
        %542 = vmatpush1.bf16.xpose.msra.mxu0 0
        %543 = vmatprep.subr.bf16.mxu0 0
        %544 = vmatpush1.bf16.xpose.msra.mxu0 0
        %545 = vmatprep.subr.bf16.mxu0 0
        %546 = vmatpush1.bf16.xpose.msra.mxu0 0
        %547 = vmatprep.subr.bf16.mxu0 0
        %548 = vmatpush1.bf16.xpose.msra.mxu0 0
        %549 = vmatprep.subr.bf16.mxu0 0
        %550 = vmatpush1.bf16.xpose.msra.mxu0 0
        %551 = vmatprep.subr.bf16.mxu0 0
        %552 = vmatpush1.bf16.xpose.msra.mxu0 0
        %553 = vmatprep.subr.bf16.mxu0 0
        %554 = vmatpush1.bf16.xpose.msra.mxu0 %v537
        %555 = vmatprep.subr.bf16.mxu0 0
        %556 = vmatpush2.bf16.xpose.msra.mxu0 0
        %557 = vmatprep.subr.bf16.mxu0 0
        %558 = vmatpush2.bf16.xpose.msra.mxu0 0
        %559 = vmatprep.subr.bf16.mxu0 0
        %560 = vmatpush2.bf16.xpose.msra.mxu0 0
        %561 = vmatprep.subr.bf16.mxu0 0
        %562 = vmatpush2.bf16.xpose.msra.mxu0 0
        %563 = vmatprep.subr.bf16.mxu0 0
        %564 = vmatpush2.bf16.xpose.msra.mxu0 0
        %565 = vmatprep.subr.bf16.mxu0 0
        %566 = vmatpush2.bf16.xpose.msra.mxu0 0
        %567 = vmatprep.subr.bf16.mxu0 0
        %568 = vmatpush2.bf16.xpose.msra.mxu0 0
        %569 = vmatprep.subr.bf16.mxu0 0
        %570 = vmatpush2.bf16.xpose.msra.mxu0 0
        %571 = vmatprep.mubr.bf16.mxu0 0
        %572 = vmatmul.mubr.bf16.gmra.mxu0 %v534
        %v573 = vpop.f32.mrf.mxu0
        %v574 = vadd.f32 0.0, %v573
        %v575 = vpop.f32.mrf.mxu0
        %v576 = vpop.f32.mrf.mxu0
        %v577 = vpop.f32.mrf.mxu0
        %578 = vdwg.mxu0
        %v579 = vsel %vm309, %v574, -inf
        %580 = vmax.xlane.f32.xlu0 %v579
        %v581 = vpop.xlane.xlu0 %580
        %v582 = vsub.f32 %v574, %v581
        %v583 = vmul.f32 %v582, 1.442695
        %v584 = vpow.pop %v583
        %v585 = vsel %vm309, %v584, 0.0
        %586 = vadd.xlane.f32.xlu0 %v585
        %v587 = vpop.xlane.xlu0 %586
        %v588 = vrcp.pop %v587
        %v589 = vmul.f32 %v584, %v588
        %v590 = vpack.c.bf16 %v589, %v589
        %591 = vrot.lane.b32.xlu0 %v305, 48
        %v592 = vpop.permute.xlu0 %591
        %v594 = vsel %vm309, %v590, 0
        %v597 = vsel %vm373, %v592, 0
        %599 = vmatprep.subr.bf16.mxu0 0
        %600 = vmatpush1.bf16.msra.mxu0 0
        %601 = vmatprep.subr.bf16.mxu0 0
        %602 = vmatpush1.bf16.msra.mxu0 0
        %603 = vmatprep.subr.bf16.mxu0 0
        %604 = vmatpush1.bf16.msra.mxu0 0
        %605 = vmatprep.subr.bf16.mxu0 0
        %606 = vmatpush1.bf16.msra.mxu0 0
        %607 = vmatprep.subr.bf16.mxu0 0
        %608 = vmatpush1.bf16.msra.mxu0 0
        %609 = vmatprep.subr.bf16.mxu0 0
        %610 = vmatpush1.bf16.msra.mxu0 0
        %611 = vmatprep.subr.bf16.mxu0 0
        %612 = vmatpush1.bf16.msra.mxu0 0
        %613 = vmatprep.subr.bf16.mxu0 0
        %614 = vmatpush1.bf16.msra.mxu0 %v597
        %615 = vmatprep.subr.bf16.mxu0 0
        %616 = vmatpush2.bf16.msra.mxu0 0
        %617 = vmatprep.subr.bf16.mxu0 0
        %618 = vmatpush2.bf16.msra.mxu0 0
        %619 = vmatprep.subr.bf16.mxu0 0
        %620 = vmatpush2.bf16.msra.mxu0 0
        %621 = vmatprep.subr.bf16.mxu0 0
        %622 = vmatpush2.bf16.msra.mxu0 0
        %623 = vmatprep.subr.bf16.mxu0 0
        %624 = vmatpush2.bf16.msra.mxu0 0
        %625 = vmatprep.subr.bf16.mxu0 0
        %626 = vmatpush2.bf16.msra.mxu0 0
        %627 = vmatprep.subr.bf16.mxu0 0
        %628 = vmatpush2.bf16.msra.mxu0 0
        %629 = vmatprep.subr.bf16.mxu0 0
        %630 = vmatpush2.bf16.msra.mxu0 0
        %631 = vmatprep.mubr.bf16.mxu0 0
        %632 = vmatmul.mubr.bf16.gmra.mxu0 %v594
        %v633 = vpop.f32.mrf.mxu0
        %v634 = vadd.f32 0.0, %v633
        %v635 = vpop.f32.mrf.mxu0
        %v636 = vpop.f32.mrf.mxu0
        %v637 = vpop.f32.mrf.mxu0
        %638 = vdwg.mxu0
        %v639 = vpack.c.bf16 %v634, %v634
        %640 = vrot.lane.b32.xlu0 %v305, 104
        %v641 = vpop.permute.xlu0 %640
        %642 = vrot.lane.b32.xlu0 %v305, 72
        %v643 = vpop.permute.xlu0 %642
        %v645 = vsel %vm309, %v641, 0
        %v648 = vsel %vm309, %v643, 0
        %650 = vmatprep.subr.bf16.mxu0 0
        %651 = vmatpush1.bf16.xpose.msra.mxu0 0
        %652 = vmatprep.subr.bf16.mxu0 0
        %653 = vmatpush1.bf16.xpose.msra.mxu0 0
        %654 = vmatprep.subr.bf16.mxu0 0
        %655 = vmatpush1.bf16.xpose.msra.mxu0 0
        %656 = vmatprep.subr.bf16.mxu0 0
        %657 = vmatpush1.bf16.xpose.msra.mxu0 0
        %658 = vmatprep.subr.bf16.mxu0 0
        %659 = vmatpush1.bf16.xpose.msra.mxu0 0
        %660 = vmatprep.subr.bf16.mxu0 0
        %661 = vmatpush1.bf16.xpose.msra.mxu0 0
        %662 = vmatprep.subr.bf16.mxu0 0
        %663 = vmatpush1.bf16.xpose.msra.mxu0 0
        %664 = vmatprep.subr.bf16.mxu0 0
        %665 = vmatpush1.bf16.xpose.msra.mxu0 %v648
        %666 = vmatprep.subr.bf16.mxu0 0
        %667 = vmatpush2.bf16.xpose.msra.mxu0 0
        %668 = vmatprep.subr.bf16.mxu0 0
        %669 = vmatpush2.bf16.xpose.msra.mxu0 0
        %670 = vmatprep.subr.bf16.mxu0 0
        %671 = vmatpush2.bf16.xpose.msra.mxu0 0
        %672 = vmatprep.subr.bf16.mxu0 0
        %673 = vmatpush2.bf16.xpose.msra.mxu0 0
        %674 = vmatprep.subr.bf16.mxu0 0
        %675 = vmatpush2.bf16.xpose.msra.mxu0 0
        %676 = vmatprep.subr.bf16.mxu0 0
        %677 = vmatpush2.bf16.xpose.msra.mxu0 0
        %678 = vmatprep.subr.bf16.mxu0 0
        %679 = vmatpush2.bf16.xpose.msra.mxu0 0
        %680 = vmatprep.subr.bf16.mxu0 0
        %681 = vmatpush2.bf16.xpose.msra.mxu0 0
        %682 = vmatprep.mubr.bf16.mxu0 0
        %683 = vmatmul.mubr.bf16.gmra.mxu0 %v645
        %v684 = vpop.f32.mrf.mxu0
        %v685 = vadd.f32 0.0, %v684
        %v686 = vpop.f32.mrf.mxu0
        %v687 = vpop.f32.mrf.mxu0
        %v688 = vpop.f32.mrf.mxu0
        %689 = vdwg.mxu0
        %v690 = vsel %vm309, %v685, -inf
        %691 = vmax.xlane.f32.xlu0 %v690
        %v692 = vpop.xlane.xlu0 %691
        %v693 = vsub.f32 %v685, %v692
        %v694 = vmul.f32 %v693, 1.442695
        %v695 = vpow.pop %v694
        %v696 = vsel %vm309, %v695, 0.0
        %697 = vadd.xlane.f32.xlu0 %v696
        %v698 = vpop.xlane.xlu0 %697
        %v699 = vrcp.pop %v698
        %v700 = vmul.f32 %v695, %v699
        %v701 = vpack.c.bf16 %v700, %v700
        %702 = vrot.lane.b32.xlu0 %v305, 40
        %v703 = vpop.permute.xlu0 %702
        %v705 = vsel %vm309, %v701, 0
        %v708 = vsel %vm373, %v703, 0
        %710 = vmatprep.subr.bf16.mxu0 0
        %711 = vmatpush1.bf16.msra.mxu0 0
        %712 = vmatprep.subr.bf16.mxu0 0
        %713 = vmatpush1.bf16.msra.mxu0 0
        %714 = vmatprep.subr.bf16.mxu0 0
        %715 = vmatpush1.bf16.msra.mxu0 0
        %716 = vmatprep.subr.bf16.mxu0 0
        %717 = vmatpush1.bf16.msra.mxu0 0
        %718 = vmatprep.subr.bf16.mxu0 0
        %719 = vmatpush1.bf16.msra.mxu0 0
        %720 = vmatprep.subr.bf16.mxu0 0
        %721 = vmatpush1.bf16.msra.mxu0 0
        %722 = vmatprep.subr.bf16.mxu0 0
        %723 = vmatpush1.bf16.msra.mxu0 0
        %724 = vmatprep.subr.bf16.mxu0 0
        %725 = vmatpush1.bf16.msra.mxu0 %v708
        %726 = vmatprep.subr.bf16.mxu0 0
        %727 = vmatpush2.bf16.msra.mxu0 0
        %728 = vmatprep.subr.bf16.mxu0 0
        %729 = vmatpush2.bf16.msra.mxu0 0
        %730 = vmatprep.subr.bf16.mxu0 0
        %731 = vmatpush2.bf16.msra.mxu0 0
        %732 = vmatprep.subr.bf16.mxu0 0
        %733 = vmatpush2.bf16.msra.mxu0 0
        %734 = vmatprep.subr.bf16.mxu0 0
        %735 = vmatpush2.bf16.msra.mxu0 0
        %736 = vmatprep.subr.bf16.mxu0 0
        %737 = vmatpush2.bf16.msra.mxu0 0
        %738 = vmatprep.subr.bf16.mxu0 0
        %739 = vmatpush2.bf16.msra.mxu0 0
        %740 = vmatprep.subr.bf16.mxu0 0
        %741 = vmatpush2.bf16.msra.mxu0 0
        %742 = vmatprep.mubr.bf16.mxu0 0
        %743 = vmatmul.mubr.bf16.gmra.mxu0 %v705
        %v744 = vpop.f32.mrf.mxu0
        %v745 = vadd.f32 0.0, %v744
        %v746 = vpop.f32.mrf.mxu0
        %v747 = vpop.f32.mrf.mxu0
        %v748 = vpop.f32.mrf.mxu0
        %749 = vdwg.mxu0
        %v750 = vpack.c.bf16 %v745, %v745
        %752 = vrot.lane.b32.xlu0 %v528, 8
        %v753 = vpop.permute.xlu0 %752
        %755 = vrot.lane.b32.xlu0 %v639, 16
        %v756 = vpop.permute.xlu0 %755
        %758 = vrot.lane.b32.xlu0 %v750, 24
        %v759 = vpop.permute.xlu0 %758
        %v762 = vsel %vm309, %v417, %v753
        %vm763 = vcmask 130048
        %v765 = vsel %vm763, %v762, %v756
        %vm766 = vcmask 195584
        %v768 = vsel %vm766, %v765, %v759
        %vm770 = vcmask 257024
        %771 = vst.msk [vmem:[#allocation2] sm:$0xf] %vm770, %v768
        %v772 = vld [vmem:[#allocation2] sm:$0xf]
        %v773 = vld [vmem:[#allocation8] sm:$0xf]
        %v774 = vld [vmem:[#allocation8 + $0x4] sm:$0xf]
        %v775 = vld [vmem:[#allocation8 + $0x8] sm:$0xf]
        %v776 = vld [vmem:[#allocation8 + $0xc] sm:$0xf]
        %v777 = vld [vmem:[%s3] sm:$0x1]
        %v779 = vlaneseq
        %v780 = vshrl.u32 %v779, 7
        %v781 = vsub.s32 0, %v780
        %v782 = vrot.slane %v777, %v781
        %v788 = vunpack.c.l.b16 %v773
        %v789 = vunpack.c.l.b16 %v774
        %v790 = vunpack.c.l.b16 %v775
        %v791 = vunpack.c.l.b16 %v776
        %v792 = vpack.c.b16 %v789, %v788
        %v793 = vpack.c.b16 %v791, %v790
        %v797 = vsel %vm261, %v772, 0
        %799 = vmatprep.subr.bf16.mxu0 0
        %800 = vmatpush1.bf16.msra.mxu0 0
        %801 = vmatprep.subr.bf16.mxu0 0
        %802 = vmatpush1.bf16.msra.mxu0 0
        %803 = vmatprep.subr.bf16.mxu0 0
        %804 = vmatpush1.bf16.msra.mxu0 0
        %805 = vmatprep.subr.bf16.mxu0 0
        %806 = vmatpush1.bf16.msra.mxu0 0
        %807 = vmatprep.subr.bf16.mxu0 0
        %808 = vmatpush1.bf16.msra.mxu0 0
        %809 = vmatprep.subr.bf16.mxu0 0
        %810 = vmatpush1.bf16.msra.mxu0 0
        %811 = vmatprep.subr.bf16.mxu0 0
        %812 = vmatpush1.bf16.msra.mxu0 %v793
        %813 = vmatprep.subr.bf16.mxu0 0
        %814 = vmatpush1.bf16.msra.mxu0 %v792
        %815 = vmatprep.subr.bf16.mxu0 0
        %816 = vmatpush2.bf16.msra.mxu0 0
        %817 = vmatprep.subr.bf16.mxu0 0
        %818 = vmatpush2.bf16.msra.mxu0 0
        %819 = vmatprep.subr.bf16.mxu0 0
        %820 = vmatpush2.bf16.msra.mxu0 0
        %821 = vmatprep.subr.bf16.mxu0 0
        %822 = vmatpush2.bf16.msra.mxu0 0
        %823 = vmatprep.subr.bf16.mxu0 0
        %824 = vmatpush2.bf16.msra.mxu0 0
        %825 = vmatprep.subr.bf16.mxu0 0
        %826 = vmatpush2.bf16.msra.mxu0 0
        %827 = vmatprep.subr.bf16.mxu0 0
        %828 = vmatpush2.bf16.msra.mxu0 0
        %829 = vmatprep.subr.bf16.mxu0 0
        %830 = vmatpush2.bf16.msra.mxu0 0
        %831 = vmatprep.mubr.bf16.mxu0 0
        %832 = vmatmul.mubr.bf16.gmra.mxu0 %v797
        %v833 = vpop.f32.mrf.mxu0
        %v834 = vadd.f32 %v782, %v833
        %v835 = vpop.f32.mrf.mxu0
        %v836 = vpop.f32.mrf.mxu0
        %v837 = vpop.f32.mrf.mxu0
        %838 = vdwg.mxu0
        %839 = vst.msk [vmem:[%s241] sm:$0xff] %vm261, %v834
        %s840 = sand.u32 %s119, 1
        %s841 = scalar_lea.sflag [#allocation5], %s840
        %s842 = sand.u32 %s119, 1
        %s843 = smul.addr %s842, 8
        %s844 = scalar_lea.vmem [#allocation9], %s843
        // Predicated region
        $region49: #{tpu_custom_call.1} parent=35 // pred_check
          %p845 = pneg %p129
        $region50: #{tpu_custom_call.1} parent=35 // pred_check_branch
          %847 = sbr.rel (%p845) target = $region52
        $region51: #{tpu_custom_call.1} parent=35 // pred_region
          %s849 = ssub.s32 128, 128
          %850 = vsyncadd %s841, %s849
          %s851 = smul.addr %s22, 128
          %s852 = scalar_lea.hbm %s4, %s851
          %s854 = sshll.u32 %s844, 4
          %s855 = int_to_ptr.vmem [resolvable:$true] %s854
          %857 = dma.vmem_to_hbm [thread:$0]  %s855, 128, %s852, %s841
        $region52: #{tpu_custom_call.1} parent=35 // pred_fallthru
          _
      $region36: #{tpu_custom_call.1} parent=5 // pred_fallthru
        _
      %p858 = scmp.le.s32.totalorder 2, %s17
      // Predicated region
      $region53: #{tpu_custom_call.1} parent=5 // pred_check
        %p859 = pneg %p858
      $region54: #{tpu_custom_call.1} parent=5 // pred_check_branch
        %861 = sbr.rel (%p859) target = $region56
      $region55: #{tpu_custom_call.1} parent=5 // pred_region
        %s862 = ssub.s32 %s17, 2
        // Predicated region
        $region57: #{tpu_custom_call.1} parent=55 // pred_check
          %p863 = pneg %p135
        $region58: #{tpu_custom_call.1} parent=55 // pred_check_branch
          %865 = sbr.rel (%p863) target = $region60
        $region59: #{tpu_custom_call.1} parent=55 // pred_region
          %s866 = sand.u32 %s120, 1
          %s867 = scalar_lea.sflag [#allocation5], %s866
          %s868 = sand.u32 %s120, 1
          %s869 = smul.addr %s868, 8
          %s870 = scalar_lea.vmem [#allocation9], %s869
          %871 = dma.done %s867, 128
        $region60: #{tpu_custom_call.1} parent=55 // pred_fallthru
          _
      $region56: #{tpu_custom_call.1} parent=5 // pred_fallthru
        _
    $region6: #{tpu_custom_call.1} parent=1 // loop_footer
      %s21 = sadd.s32 1, %s17
    $region7: #{tpu_custom_call.1} parent=1 // loop_footer_branch
      %16 = sbr.rel target = $region3
    $region8: #{tpu_custom_call.1} parent=1 // loop_exit
      _
    %872 = vsyncpa [#allocation4], 1
    %s873 = scalar_lea.sflag [#allocation4], 1
    %874 = vsyncpa %s873, 1
    %875 = vsyncpa [#allocation7], 1
    %876 = vsyncpa [#allocation5], 1
    %s877 = scalar_lea.sflag [#allocation5], 1
    %878 = vsyncpa %s877, 1

</llo_original>
